<compile_context>
chip_gen: v7x
topology: tpu7x:2x2x1
jax: 0.10.0
libtpu: 0.0.40
codegen_flags: <defaults>
</compile_context>

<pallas_src>
import functools

import jax
import jax.numpy as jnp
from jax.experimental import pallas as pl
from jax.experimental.pallas import tpu as pltpu

INPUT_DIM = 100
LATENT_DIM = 20
HIDDEN_DIM = 50

# lane-padded sizes (last dims multiples of 128 -> unmasked full-width stores)
IN_PAD = 128
HID_PAD = 128
LAT_PAD = 128
OUT_PAD = IN_PAD + 2 * LAT_PAD  # output slab layout: [xrec | mu | logvar]


def _round_up(n, m):
    return (n + m - 1) // m * m


def _pad2d(a, rows, cols):
    return jnp.pad(a, ((0, rows - a.shape[0]), (0, cols - a.shape[1])))


def vae_forward_kernel(x_ref, eps_ref,
                       w1_ref, b1_ref,
                       w2mu_ref, b2mu_ref, w2lv_ref, b2lv_ref,
                       w3_ref, b3_ref, w4_ref, b4_ref,
                       out_ref):
    x = x_ref[...]                                                    # [TB, IN_PAD]

    # ---- encoder ----
    h = jnp.dot(x, w1_ref[...], preferred_element_type=jnp.float32) + b1_ref[...]
    h = jnp.maximum(h, 0.0)                                           # ReLU
    # split heads instead of an unaligned chunk at lane offset 20
    mu = jnp.dot(h, w2mu_ref[...], preferred_element_type=jnp.float32) + b2mu_ref[...]
    logvar = jnp.dot(h, w2lv_ref[...], preferred_element_type=jnp.float32) + b2lv_ref[...]

    # ---- reparameterize ----
    # padded lanes stay zero: logvar_pad == 0 -> std == 1, eps_pad == 0 -> z_pad == 0
    std = jnp.exp(0.5 * logvar)
    z = mu + eps_ref[...] * std                                       # [TB, LAT_PAD]

    # ---- decoder ----
    h2 = jnp.dot(z, w3_ref[...], preferred_element_type=jnp.float32) + b3_ref[...]
    h2 = jnp.maximum(h2, 0.0)                                         # ReLU
    logits = jnp.dot(h2, w4_ref[...], preferred_element_type=jnp.float32) + b4_ref[...]
    xrec = jax.nn.sigmoid(logits)                                     # Sigmoid

    # one lane-dense output slab; all writes at 128-aligned lane offsets
    out_ref[:, :IN_PAD] = xrec
    out_ref[:, IN_PAD:IN_PAD + LAT_PAD] = mu
    out_ref[:, IN_PAD + LAT_PAD:] = logvar


def init_params(key):
    """Deterministic PyTorch-style uniform(-1/sqrt(fan_in), 1/sqrt(fan_in)) init.
    Weights stored as [in, out] (pre-transposed)."""
    ks = jax.random.split(key, 8)

    def lin(kw, kb, fan_in, fan_out):
        bound = 1.0 / jnp.sqrt(jnp.float32(fan_in))
        w = jax.random.uniform(kw, (fan_in, fan_out), jnp.float32, -bound, bound)
        b = jax.random.uniform(kb, (1, fan_out), jnp.float32, -bound, bound)
        return w, b

    w1, b1 = lin(ks[0], ks[1], INPUT_DIM, HIDDEN_DIM)
    w2, b2 = lin(ks[2], ks[3], HIDDEN_DIM, LATENT_DIM * 2)
    w3, b3 = lin(ks[4], ks[5], LATENT_DIM, HIDDEN_DIM)
    w4, b4 = lin(ks[6], ks[7], HIDDEN_DIM, INPUT_DIM)
    return (w1, b1, w2, b2, w3, b3, w4, b4)


@functools.partial(jax.jit, static_argnames=("max_batch_tile",))
def vae_forward(x, eps, params, max_batch_tile=512):
    w1, b1, w2, b2, w3, b3, w4, b4 = params
    B = x.shape[0]

    # split the encoder output head -> two matmuls, no in-kernel unaligned slice
    w2_mu, w2_lv = w2[:, :LATENT_DIM], w2[:, LATENT_DIM:]
    b2_mu, b2_lv = b2[:, :LATENT_DIM], b2[:, LATENT_DIM:]

    # zero-pad every feature dim up to a lane multiple (padding is exact: +0.0)
    # TODO(synk): optionally cast matmul operands to bf16 on v6e/v7x (f32 kept for exact parity)
    w1_p = _pad2d(w1, IN_PAD, HID_PAD)
    b1_p = _pad2d(b1, 1, HID_PAD)
    w2mu_p = _pad2d(w2_mu, HID_PAD, LAT_PAD)
    b2mu_p = _pad2d(b2_mu, 1, LAT_PAD)
    w2lv_p = _pad2d(w2_lv, HID_PAD, LAT_PAD)
    b2lv_p = _pad2d(b2_lv, 1, LAT_PAD)
    w3_p = _pad2d(w3, LAT_PAD, HID_PAD)
    b3_p = _pad2d(b3, 1, HID_PAD)
    w4_p = _pad2d(w4, HID_PAD, IN_PAD)
    b4_p = _pad2d(b4, 1, IN_PAD)

    # batch tiling: pick the batch tile, pad batch to a multiple of it
    tb = min(max_batch_tile, _round_up(B, 8))
    bp = _round_up(B, tb)
    x_p = _pad2d(x, bp, IN_PAD)
    eps_p = _pad2d(eps, bp, LAT_PAD)

    def batch_spec(cols):
        return pl.BlockSpec((tb, cols), lambda i: (i, 0))

    def resident(shape):
        # constant index_map -> weights/biases loaded once, VMEM-resident
        return pl.BlockSpec(shape, lambda i: (0, 0))

    out = pl.pallas_call(
        vae_forward_kernel,
        out_shape=jax.ShapeDtypeStruct((bp, OUT_PAD), jnp.float32),
        grid=(bp // tb,),
        in_specs=[
            batch_spec(IN_PAD),             # x
            batch_spec(LAT_PAD),            # eps
            resident((IN_PAD, HID_PAD)),    # w1
            resident((1, HID_PAD)),         # b1
            resident((HID_PAD, LAT_PAD)),   # w2_mu
            resident((1, LAT_PAD)),         # b2_mu
            resident((HID_PAD, LAT_PAD)),   # w2_logvar
            resident((1, LAT_PAD)),         # b2_logvar
            resident((LAT_PAD, HID_PAD)),   # w3
            resident((1, HID_PAD)),         # b3
            resident((HID_PAD, IN_PAD)),    # w4
            resident((1, IN_PAD)),          # b4
        ],
        out_specs=batch_spec(OUT_PAD),
        compiler_params=pltpu.CompilerParams(
            dimension_semantics=("parallel",)),
    )(x_p, eps_p, w1_p, b1_p, w2mu_p, b2mu_p, w2lv_p, b2lv_p,
      w3_p, b3_p, w4_p, b4_p)

    # slice the lane-dense slab back to logical shapes in plain JAX
    x_recon = out[:B, :INPUT_DIM]
    mu = out[:B, IN_PAD:IN_PAD + LATENT_DIM]
    logvar = out[:B, IN_PAD + LAT_PAD:IN_PAD + LAT_PAD + LATENT_DIM]
    return x_recon, mu, logvar


if __name__ == "__main__":
    key = jax.random.PRNGKey(0)
    k_params, k_x, k_eps = jax.random.split(key, 3)

    batch = 8
    params = init_params(k_params)
    x = jax.random.uniform(k_x, (batch, INPUT_DIM), jnp.float32)
    eps = jax.random.normal(k_eps, (batch, LATENT_DIM), jnp.float32)

    x_recon, mu, logvar = jax.block_until_ready(vae_forward(x, eps, params))

    # pure-JAX reference (same math as the PyTorch module)
    w1, b1, w2, b2, w3, b3, w4, b4 = params
    h = jnp.maximum(x @ w1 + b1, 0.0)
    enc = h @ w2 + b2
    mu_ref, logvar_ref = enc[:, :LATENT_DIM], enc[:, LATENT_DIM:]
    z = mu_ref + eps * jnp.exp(0.5 * logvar_ref)
    h2 = jnp.maximum(z @ w3 + b3, 0.0)
    xrec_ref = jax.nn.sigmoid(h2 @ w4 + b4)

    assert x_recon.shape == (batch, INPUT_DIM)
    assert mu.shape == (batch, LATENT_DIM) and logvar.shape == (batch, LATENT_DIM)
    assert jnp.allclose(x_recon, xrec_ref, atol=1e-5)
    assert jnp.allclose(mu, mu_ref, atol=1e-5)
    assert jnp.allclose(logvar, logvar_ref, atol=1e-5)

    print("KERNEL_OK")
</pallas_src>

<mosaic_0001>
module attributes {stable_mosaic.version = 11 : i64} {
  func.func @vae_forward_kernel(%arg0: i32, %arg1: memref<8x128xf32, #tpu.memory_space<vmem>>, %arg2: memref<8x128xf32, #tpu.memory_space<vmem>>, %arg3: memref<128x128xf32, #tpu.memory_space<vmem>>, %arg4: memref<1x128xf32, #tpu.memory_space<vmem>>, %arg5: memref<128x128xf32, #tpu.memory_space<vmem>>, %arg6: memref<1x128xf32, #tpu.memory_space<vmem>>, %arg7: memref<128x128xf32, #tpu.memory_space<vmem>>, %arg8: memref<1x128xf32, #tpu.memory_space<vmem>>, %arg9: memref<128x128xf32, #tpu.memory_space<vmem>>, %arg10: memref<1x128xf32, #tpu.memory_space<vmem>>, %arg11: memref<128x128xf32, #tpu.memory_space<vmem>>, %arg12: memref<1x128xf32, #tpu.memory_space<vmem>>, %arg13: memref<8x384xf32, #tpu.memory_space<vmem>>) attributes {dimension_semantics = [#tpu.dimension_semantics<parallel>], iteration_bounds = array<i64: 1>, scalar_prefetch = 0 : i64, scratch_operands = 0 : i64, tpu.core_type = #tpu.core_type<tc>, window_params = [{transform_indices = @transform_0, window_bounds = array<i64: 8, 128>}, {transform_indices = @transform_1, window_bounds = array<i64: 8, 128>}, {pipeline_mode = #tpu.pipeline_mode<synchronous>, transform_indices = @transform_2, window_bounds = array<i64: 128, 128>}, {pipeline_mode = #tpu.pipeline_mode<synchronous>, transform_indices = @transform_3, window_bounds = array<i64: 1, 128>}, {pipeline_mode = #tpu.pipeline_mode<synchronous>, transform_indices = @transform_4, window_bounds = array<i64: 128, 128>}, {pipeline_mode = #tpu.pipeline_mode<synchronous>, transform_indices = @transform_5, window_bounds = array<i64: 1, 128>}, {pipeline_mode = #tpu.pipeline_mode<synchronous>, transform_indices = @transform_6, window_bounds = array<i64: 128, 128>}, {pipeline_mode = #tpu.pipeline_mode<synchronous>, transform_indices = @transform_7, window_bounds = array<i64: 1, 128>}, {pipeline_mode = #tpu.pipeline_mode<synchronous>, transform_indices = @transform_8, window_bounds = array<i64: 128, 128>}, {pipeline_mode = #tpu.pipeline_mode<synchronous>, transform_indices = @transform_9, window_bounds = array<i64: 1, 128>}, {pipeline_mode = #tpu.pipeline_mode<synchronous>, transform_indices = @transform_10, window_bounds = array<i64: 128, 128>}, {pipeline_mode = #tpu.pipeline_mode<synchronous>, transform_indices = @transform_11, window_bounds = array<i64: 1, 128>}, {transform_indices = @transform_12, window_bounds = array<i64: 8, 384>}]} {
    %c0 = arith.constant 0 : index
    %c0_0 = arith.constant 0 : index
    %0 = vector.load %arg1[%c0, %c0_0] : memref<8x128xf32, #tpu.memory_space<vmem>>, vector<8x128xf32>
    %c0_1 = arith.constant 0 : index
    %c0_2 = arith.constant 0 : index
    %1 = vector.load %arg3[%c0_1, %c0_2] : memref<128x128xf32, #tpu.memory_space<vmem>>, vector<128x128xf32>
    %cst = arith.constant dense<0.000000e+00> : vector<8x128xf32>
    %2 = tpu.matmul %0, %1, %cst {dimension_numbers = #tpu.dot_dimension_numbers<[1], [0], [0], [1], [0, 0, 1, 1], [], []>} : vector<8x128xf32>, vector<128x128xf32>, vector<8x128xf32> -> vector<8x128xf32>
    %c0_3 = arith.constant 0 : index
    %c0_4 = arith.constant 0 : index
    %3 = vector.load %arg4[%c0_3, %c0_4] : memref<1x128xf32, #tpu.memory_space<vmem>>, vector<1x128xf32>
    %4 = vector.broadcast %3 : vector<1x128xf32> to vector<8x128xf32>
    %5 = arith.addf %2, %4 : vector<8x128xf32>
    %cst_5 = arith.constant 0.000000e+00 : f32
    %6 = vector.broadcast %cst_5 : f32 to vector<8x128xf32>
    %7 = arith.maximumf %5, %6 : vector<8x128xf32>
    %c0_6 = arith.constant 0 : index
    %c0_7 = arith.constant 0 : index
    %8 = vector.load %arg5[%c0_6, %c0_7] : memref<128x128xf32, #tpu.memory_space<vmem>>, vector<128x128xf32>
    %cst_8 = arith.constant dense<0.000000e+00> : vector<8x128xf32>
    %9 = tpu.matmul %7, %8, %cst_8 {dimension_numbers = #tpu.dot_dimension_numbers<[1], [0], [0], [1], [0, 0, 1, 1], [], []>} : vector<8x128xf32>, vector<128x128xf32>, vector<8x128xf32> -> vector<8x128xf32>
    %c0_9 = arith.constant 0 : index
    %c0_10 = arith.constant 0 : index
    %10 = vector.load %arg6[%c0_9, %c0_10] : memref<1x128xf32, #tpu.memory_space<vmem>>, vector<1x128xf32>
    %11 = vector.broadcast %10 : vector<1x128xf32> to vector<8x128xf32>
    %12 = arith.addf %9, %11 : vector<8x128xf32>
    %c0_11 = arith.constant 0 : index
    %c0_12 = arith.constant 0 : index
    %13 = vector.load %arg7[%c0_11, %c0_12] : memref<128x128xf32, #tpu.memory_space<vmem>>, vector<128x128xf32>
    %cst_13 = arith.constant dense<0.000000e+00> : vector<8x128xf32>
    %14 = tpu.matmul %7, %13, %cst_13 {dimension_numbers = #tpu.dot_dimension_numbers<[1], [0], [0], [1], [0, 0, 1, 1], [], []>} : vector<8x128xf32>, vector<128x128xf32>, vector<8x128xf32> -> vector<8x128xf32>
    %c0_14 = arith.constant 0 : index
    %c0_15 = arith.constant 0 : index
    %15 = vector.load %arg8[%c0_14, %c0_15] : memref<1x128xf32, #tpu.memory_space<vmem>>, vector<1x128xf32>
    %16 = vector.broadcast %15 : vector<1x128xf32> to vector<8x128xf32>
    %17 = arith.addf %14, %16 : vector<8x128xf32>
    %cst_16 = arith.constant 5.000000e-01 : f32
    %18 = vector.broadcast %cst_16 : f32 to vector<8x128xf32>
    %19 = arith.mulf %18, %17 : vector<8x128xf32>
    %20 = math.exp %19 : vector<8x128xf32>
    %c0_17 = arith.constant 0 : index
    %c0_18 = arith.constant 0 : index
    %21 = vector.load %arg2[%c0_17, %c0_18] : memref<8x128xf32, #tpu.memory_space<vmem>>, vector<8x128xf32>
    %22 = arith.mulf %21, %20 : vector<8x128xf32>
    %23 = arith.addf %12, %22 : vector<8x128xf32>
    %c0_19 = arith.constant 0 : index
    %c0_20 = arith.constant 0 : index
    %24 = vector.load %arg9[%c0_19, %c0_20] : memref<128x128xf32, #tpu.memory_space<vmem>>, vector<128x128xf32>
    %cst_21 = arith.constant dense<0.000000e+00> : vector<8x128xf32>
    %25 = tpu.matmul %23, %24, %cst_21 {dimension_numbers = #tpu.dot_dimension_numbers<[1], [0], [0], [1], [0, 0, 1, 1], [], []>} : vector<8x128xf32>, vector<128x128xf32>, vector<8x128xf32> -> vector<8x128xf32>
    %c0_22 = arith.constant 0 : index
    %c0_23 = arith.constant 0 : index
    %26 = vector.load %arg10[%c0_22, %c0_23] : memref<1x128xf32, #tpu.memory_space<vmem>>, vector<1x128xf32>
    %27 = vector.broadcast %26 : vector<1x128xf32> to vector<8x128xf32>
    %28 = arith.addf %25, %27 : vector<8x128xf32>
    %cst_24 = arith.constant 0.000000e+00 : f32
    %29 = vector.broadcast %cst_24 : f32 to vector<8x128xf32>
    %30 = arith.maximumf %28, %29 : vector<8x128xf32>
    %c0_25 = arith.constant 0 : index
    %c0_26 = arith.constant 0 : index
    %31 = vector.load %arg11[%c0_25, %c0_26] : memref<128x128xf32, #tpu.memory_space<vmem>>, vector<128x128xf32>
    %cst_27 = arith.constant dense<0.000000e+00> : vector<8x128xf32>
    %32 = tpu.matmul %30, %31, %cst_27 {dimension_numbers = #tpu.dot_dimension_numbers<[1], [0], [0], [1], [0, 0, 1, 1], [], []>} : vector<8x128xf32>, vector<128x128xf32>, vector<8x128xf32> -> vector<8x128xf32>
    %c0_28 = arith.constant 0 : index
    %c0_29 = arith.constant 0 : index
    %33 = vector.load %arg12[%c0_28, %c0_29] : memref<1x128xf32, #tpu.memory_space<vmem>>, vector<1x128xf32>
    %34 = vector.broadcast %33 : vector<1x128xf32> to vector<8x128xf32>
    %35 = arith.addf %32, %34 : vector<8x128xf32>
    %36 = arith.negf %35 : vector<8x128xf32>
    %37 = math.exp %36 : vector<8x128xf32>
    %cst_30 = arith.constant 1.000000e+00 : f32
    %38 = vector.broadcast %cst_30 : f32 to vector<8x128xf32>
    %39 = arith.addf %38, %37 : vector<8x128xf32>
    %40 = arith.divf %38, %39 : vector<8x128xf32>
    %c0_31 = arith.constant 0 : index
    %c0_32 = arith.constant 0 : index
    %41 = vector.load %arg13[%c0_31, %c0_32] : memref<8x384xf32, #tpu.memory_space<vmem>>, vector<8x128xf32>
    tpu.vector_store %arg13[%c0_31, %c0_32], %40 {strides = array<i32>} : memref<8x384xf32, #tpu.memory_space<vmem>>, vector<8x128xf32>,
    %c0_33 = arith.constant 0 : index
    %c128 = arith.constant 128 : index
    %42 = vector.load %arg13[%c0_33, %c128] : memref<8x384xf32, #tpu.memory_space<vmem>>, vector<8x128xf32>
    tpu.vector_store %arg13[%c0_33, %c128], %12 {strides = array<i32>} : memref<8x384xf32, #tpu.memory_space<vmem>>, vector<8x128xf32>,
    %c0_34 = arith.constant 0 : index
    %c256 = arith.constant 256 : index
    %43 = vector.load %arg13[%c0_34, %c256] : memref<8x384xf32, #tpu.memory_space<vmem>>, vector<8x128xf32>
    tpu.vector_store %arg13[%c0_34, %c256], %17 {strides = array<i32>} : memref<8x384xf32, #tpu.memory_space<vmem>>, vector<8x128xf32>,
    return
  }
  func.func @transform_0(%arg0: i32) -> (i32, i32) {
    %c0_i32 = arith.constant 0 : i32
    %c0_i32_0 = arith.constant 0 : i32
    return %arg0, %c0_i32 : i32, i32
  }
  func.func @transform_1(%arg0: i32) -> (i32, i32) {
    %c0_i32 = arith.constant 0 : i32
    %c0_i32_0 = arith.constant 0 : i32
    return %arg0, %c0_i32 : i32, i32
  }
  func.func @transform_2(%arg0: i32) -> (i32, i32) {
    %c0_i32 = arith.constant 0 : i32
    %c0_i32_0 = arith.constant 0 : i32
    %c0_i32_1 = arith.constant 0 : i32
    return %c0_i32, %c0_i32_0 : i32, i32
  }
  func.func @transform_3(%arg0: i32) -> (i32, i32) {
    %c0_i32 = arith.constant 0 : i32
    %c0_i32_0 = arith.constant 0 : i32
    %c0_i32_1 = arith.constant 0 : i32
    return %c0_i32, %c0_i32_0 : i32, i32
  }
  func.func @transform_4(%arg0: i32) -> (i32, i32) {
    %c0_i32 = arith.constant 0 : i32
    %c0_i32_0 = arith.constant 0 : i32
    %c0_i32_1 = arith.constant 0 : i32
    return %c0_i32, %c0_i32_0 : i32, i32
  }
  func.func @transform_5(%arg0: i32) -> (i32, i32) {
    %c0_i32 = arith.constant 0 : i32
    %c0_i32_0 = arith.constant 0 : i32
    %c0_i32_1 = arith.constant 0 : i32
    return %c0_i32, %c0_i32_0 : i32, i32
  }
  func.func @transform_6(%arg0: i32) -> (i32, i32) {
    %c0_i32 = arith.constant 0 : i32
    %c0_i32_0 = arith.constant 0 : i32
    %c0_i32_1 = arith.constant 0 : i32
    return %c0_i32, %c0_i32_0 : i32, i32
  }
  func.func @transform_7(%arg0: i32) -> (i32, i32) {
    %c0_i32 = arith.constant 0 : i32
    %c0_i32_0 = arith.constant 0 : i32
    %c0_i32_1 = arith.constant 0 : i32
    return %c0_i32, %c0_i32_0 : i32, i32
  }
  func.func @transform_8(%arg0: i32) -> (i32, i32) {
    %c0_i32 = arith.constant 0 : i32
    %c0_i32_0 = arith.constant 0 : i32
    %c0_i32_1 = arith.constant 0 : i32
    return %c0_i32, %c0_i32_0 : i32, i32
  }
  func.func @transform_9(%arg0: i32) -> (i32, i32) {
    %c0_i32 = arith.constant 0 : i32
    %c0_i32_0 = arith.constant 0 : i32
    %c0_i32_1 = arith.constant 0 : i32
    return %c0_i32, %c0_i32_0 : i32, i32
  }
  func.func @transform_10(%arg0: i32) -> (i32, i32) {
    %c0_i32 = arith.constant 0 : i32
    %c0_i32_0 = arith.constant 0 : i32
    %c0_i32_1 = arith.constant 0 : i32
    return %c0_i32, %c0_i32_0 : i32, i32
  }
  func.func @transform_11(%arg0: i32) -> (i32, i32) {
    %c0_i32 = arith.constant 0 : i32
    %c0_i32_0 = arith.constant 0 : i32
    %c0_i32_1 = arith.constant 0 : i32
    return %c0_i32, %c0_i32_0 : i32, i32
  }
  func.func @transform_12(%arg0: i32) -> (i32, i32) {
    %c0_i32 = arith.constant 0 : i32
    %c0_i32_0 = arith.constant 0 : i32
    return %arg0, %c0_i32 : i32, i32
  }
}

</mosaic_0001>

<llo_original>
// kernel: vae_forward.1
$region0: #{vae_forward.1}
  #allocation0 [shape = 'u32[]', space=smem, size = 0x4, offset = 0x4, fixed_abs, tag = 'smem constant byte address 0x4 - core index']
  #allocation1 [shape = 'u32[144,128]{1,0:T(1,128)}', space=vmem, size = 0x12000, scoped, tag = 'internal scratch']
  %s0 = inlined_call_operand.vmem [shape: f32[8,128], index: 0, kind: input, shape index: {}]
  %s1 = inlined_call_operand.vmem [shape: f32[8,128], index: 1, kind: input, shape index: {}]
  %s2 = inlined_call_operand.vmem [shape: f32[128,128], index: 2, kind: input, shape index: {}]
  %s3 = inlined_call_operand.vmem [shape: f32[1,128], index: 3, kind: input, shape index: {}]
  %s4 = inlined_call_operand.vmem [shape: f32[128,128], index: 4, kind: input, shape index: {}]
  %s5 = inlined_call_operand.vmem [shape: f32[1,128], index: 5, kind: input, shape index: {}]
  %s6 = inlined_call_operand.vmem [shape: f32[128,128], index: 6, kind: input, shape index: {}]
  %s7 = inlined_call_operand.vmem [shape: f32[1,128], index: 7, kind: input, shape index: {}]
  %s8 = inlined_call_operand.vmem [shape: f32[128,128], index: 8, kind: input, shape index: {}]
  %s9 = inlined_call_operand.vmem [shape: f32[1,128], index: 9, kind: input, shape index: {}]
  %s10 = inlined_call_operand.vmem [shape: f32[128,128], index: 10, kind: input, shape index: {}]
  %s11 = inlined_call_operand.vmem [shape: f32[1,128], index: 11, kind: input, shape index: {}]
  %s12 = inlined_call_operand.vmem [shape: f32[8,384], index: 12, kind: output, shape index: {}]
  %s13 = sld [smem:[#allocation0]]
  $region58: #{vae_forward.1} parent=0
    _
  %s15 = ssub.s32 1, %s13
  %s16 = scalar_select 0, %s15, %s13
  // Predicated region
  $region2: #{vae_forward.1} parent=0 // pred_check
    _
  $region3: #{vae_forward.1} parent=0 // pred_check_branch
    %18 = sbr.rel (0) target = $region5
  $region4: #{vae_forward.1} parent=0 // pred_region
    _
  $region5: #{vae_forward.1} parent=0 // pred_fallthru
    _
  // Predicated region
  $region6: #{vae_forward.1} parent=0 // pred_check
    _
  $region7: #{vae_forward.1} parent=0 // pred_check_branch
    %20 = sbr.rel (0) target = $region9
  $region8: #{vae_forward.1} parent=0 // pred_region
    _
  $region9: #{vae_forward.1} parent=0 // pred_fallthru
    _
  // Predicated region
  $region10: #{vae_forward.1} parent=0 // pred_check
    _
  $region11: #{vae_forward.1} parent=0 // pred_check_branch
    %22 = sbr.rel (0) target = $region13
  $region12: #{vae_forward.1} parent=0 // pred_region
    _
  $region13: #{vae_forward.1} parent=0 // pred_fallthru
    _
  // Predicated region
  $region14: #{vae_forward.1} parent=0 // pred_check
    _
  $region15: #{vae_forward.1} parent=0 // pred_check_branch
    %24 = sbr.rel (0) target = $region17
  $region16: #{vae_forward.1} parent=0 // pred_region
    _
  $region17: #{vae_forward.1} parent=0 // pred_fallthru
    _
  // Predicated region
  $region18: #{vae_forward.1} parent=0 // pred_check
    _
  $region19: #{vae_forward.1} parent=0 // pred_check_branch
    %26 = sbr.rel (0) target = $region21
  $region20: #{vae_forward.1} parent=0 // pred_region
    _
  $region21: #{vae_forward.1} parent=0 // pred_fallthru
    _
  // Predicated region
  $region22: #{vae_forward.1} parent=0 // pred_check
    _
  $region23: #{vae_forward.1} parent=0 // pred_check_branch
    %28 = sbr.rel (0) target = $region25
  $region24: #{vae_forward.1} parent=0 // pred_region
    _
  $region25: #{vae_forward.1} parent=0 // pred_fallthru
    _
  // Predicated region
  $region26: #{vae_forward.1} parent=0 // pred_check
    _
  $region27: #{vae_forward.1} parent=0 // pred_check_branch
    %30 = sbr.rel (0) target = $region29
  $region28: #{vae_forward.1} parent=0 // pred_region
    _
  $region29: #{vae_forward.1} parent=0 // pred_fallthru
    _
  // Predicated region
  $region30: #{vae_forward.1} parent=0 // pred_check
    _
  $region31: #{vae_forward.1} parent=0 // pred_check_branch
    %32 = sbr.rel (0) target = $region33
  $region32: #{vae_forward.1} parent=0 // pred_region
    _
  $region33: #{vae_forward.1} parent=0 // pred_fallthru
    _
  // Predicated region
  $region34: #{vae_forward.1} parent=0 // pred_check
    _
  $region35: #{vae_forward.1} parent=0 // pred_check_branch
    %34 = sbr.rel (0) target = $region37
  $region36: #{vae_forward.1} parent=0 // pred_region
    _
  $region37: #{vae_forward.1} parent=0 // pred_fallthru
    _
  // Predicated region
  $region38: #{vae_forward.1} parent=0 // pred_check
    _
  $region39: #{vae_forward.1} parent=0 // pred_check_branch
    %36 = sbr.rel (0) target = $region41
  $region40: #{vae_forward.1} parent=0 // pred_region
    _
  $region41: #{vae_forward.1} parent=0 // pred_fallthru
    _
  // Predicated region
  $region42: #{vae_forward.1} parent=0 // pred_check
    _
  $region43: #{vae_forward.1} parent=0 // pred_check_branch
    %38 = sbr.rel (0) target = $region45
  $region44: #{vae_forward.1} parent=0 // pred_region
    _
  $region45: #{vae_forward.1} parent=0 // pred_fallthru
    _
  // Predicated region
  $region46: #{vae_forward.1} parent=0 // pred_check
    _
  $region47: #{vae_forward.1} parent=0 // pred_check_branch
    %40 = sbr.rel (0) target = $region49
  $region48: #{vae_forward.1} parent=0 // pred_region
    _
  $region49: #{vae_forward.1} parent=0 // pred_fallthru
    _
  %v41 = vld [vmem:[%s0] sm:$0xff]
  %v42 = vld [vmem:[%s2] sm:$0xff]
  %v43 = vld [vmem:[%s2 + $0x8] sm:$0xff]
  %v44 = vld [vmem:[%s2 + $0x10] sm:$0xff]
  %v45 = vld [vmem:[%s2 + $0x18] sm:$0xff]
  %v46 = vld [vmem:[%s2 + $0x20] sm:$0xff]
  %v47 = vld [vmem:[%s2 + $0x28] sm:$0xff]
  %v48 = vld [vmem:[%s2 + $0x30] sm:$0xff]
  %v49 = vld [vmem:[%s2 + $0x38] sm:$0xff]
  %v50 = vld [vmem:[%s2 + $0x40] sm:$0xff]
  %v51 = vld [vmem:[%s2 + $0x48] sm:$0xff]
  %v52 = vld [vmem:[%s2 + $0x50] sm:$0xff]
  %v53 = vld [vmem:[%s2 + $0x58] sm:$0xff]
  %v54 = vld [vmem:[%s2 + $0x60] sm:$0xff]
  %v55 = vld [vmem:[%s2 + $0x68] sm:$0xff]
  %v56 = vld [vmem:[%s2 + $0x70] sm:$0xff]
  %v57 = vld [vmem:[%s2 + $0x78] sm:$0xff]
  %v58 = vld [vmem:[%s3] sm:$0x1]
  %v60 = vlaneseq
  %v61 = vshrl.u32 %v60, 7
  %v62 = vsub.s32 0, %v61
  %v63 = vrot.slane %v58, %v62
  %65 = vmatprep.subr.mxu0 0.0
  %66 = vmatpush1.msra.mxu0 %v42
  %67 = vmatprep.subr.mxu0 0.0
  %68 = vmatpush1.msra.mxu0 %v43
  %69 = vmatprep.subr.mxu0 0.0
  %70 = vmatpush1.msra.mxu0 %v44
  %71 = vmatprep.subr.mxu0 0.0
  %72 = vmatpush1.msra.mxu0 %v45
  %73 = vmatprep.subr.mxu0 0.0
  %74 = vmatpush1.msra.mxu0 %v46
  %75 = vmatprep.subr.mxu0 0.0
  %76 = vmatpush1.msra.mxu0 %v47
  %77 = vmatprep.subr.mxu0 0.0
  %78 = vmatpush1.msra.mxu0 %v48
  %79 = vmatprep.subr.mxu0 0.0
  %80 = vmatpush1.msra.mxu0 %v49
  %81 = vmatprep.subr.mxu0 0.0
  %82 = vmatpush1.msra.mxu0 %v50
  %83 = vmatprep.subr.mxu0 0.0
  %84 = vmatpush1.msra.mxu0 %v51
  %85 = vmatprep.subr.mxu0 0.0
  %86 = vmatpush1.msra.mxu0 %v52
  %87 = vmatprep.subr.mxu0 0.0
  %88 = vmatpush1.msra.mxu0 %v53
  %89 = vmatprep.subr.mxu0 0.0
  %90 = vmatpush1.msra.mxu0 %v54
  %91 = vmatprep.subr.mxu0 0.0
  %92 = vmatpush1.msra.mxu0 %v55
  %93 = vmatprep.subr.mxu0 0.0
  %94 = vmatpush1.msra.mxu0 %v56
  %95 = vmatprep.subr.mxu0 0.0
  %96 = vmatpush1.msra.mxu0 %v57
  %97 = vmatprep.subr.mxu0 0.0
  %98 = vmatpush1.msra.mxu0 0.0
  %99 = vmatprep.subr.mxu0 0.0
  %100 = vmatpush1.msra.mxu0 0.0
  %101 = vmatprep.subr.mxu0 0.0
  %102 = vmatpush1.msra.mxu0 0.0
  %103 = vmatprep.subr.mxu0 0.0
  %104 = vmatpush1.msra.mxu0 0.0
  %105 = vmatprep.subr.mxu0 0.0
  %106 = vmatpush1.msra.mxu0 0.0
  %107 = vmatprep.subr.mxu0 0.0
  %108 = vmatpush1.msra.mxu0 0.0
  %109 = vmatprep.subr.mxu0 0.0
  %110 = vmatpush1.msra.mxu0 0.0
  %111 = vmatprep.subr.mxu0 0.0
  %112 = vmatpush1.msra.mxu0 0.0
  %113 = vmatprep.subr.mxu0 0.0
  %114 = vmatpush1.msra.mxu0 0.0
  %115 = vmatprep.subr.mxu0 0.0
  %116 = vmatpush1.msra.mxu0 0.0
  %117 = vmatprep.subr.mxu0 0.0
  %118 = vmatpush1.msra.mxu0 0.0
  %119 = vmatprep.subr.mxu0 0.0
  %120 = vmatpush1.msra.mxu0 0.0
  %121 = vmatprep.subr.mxu0 0.0
  %122 = vmatpush1.msra.mxu0 0.0
  %123 = vmatprep.subr.mxu0 0.0
  %124 = vmatpush1.msra.mxu0 0.0
  %125 = vmatprep.subr.mxu0 0.0
  %126 = vmatpush1.msra.mxu0 0.0
  %127 = vmatprep.subr.mxu0 0.0
  %128 = vmatpush1.msra.mxu0 0.0
  %129 = vmatprep.mubr.f32.mxu0 0.0
  %130 = vmatmul.mubr.f32.gmra.mrb[0].mxu0 %v41
  %v131 = vpop.f32.mrb[0].mxu0
  %v132 = vadd.f32 %v63, %v131
  %v133 = vpop.f32.mrb[0].mxu0
  %134 = vdwg.mxu0
  %v135 = vmax.f32 %v132, 0.0
  %v136 = vld [vmem:[%s4] sm:$0xff]
  %v137 = vld [vmem:[%s4 + $0x8] sm:$0xff]
  %v138 = vld [vmem:[%s4 + $0x10] sm:$0xff]
  %v139 = vld [vmem:[%s4 + $0x18] sm:$0xff]
  %v140 = vld [vmem:[%s4 + $0x20] sm:$0xff]
  %v141 = vld [vmem:[%s4 + $0x28] sm:$0xff]
  %v142 = vld [vmem:[%s4 + $0x30] sm:$0xff]
  %v143 = vld [vmem:[%s4 + $0x38] sm:$0xff]
  %v144 = vld [vmem:[%s4 + $0x40] sm:$0xff]
  %v145 = vld [vmem:[%s4 + $0x48] sm:$0xff]
  %v146 = vld [vmem:[%s4 + $0x50] sm:$0xff]
  %v147 = vld [vmem:[%s4 + $0x58] sm:$0xff]
  %v148 = vld [vmem:[%s4 + $0x60] sm:$0xff]
  %v149 = vld [vmem:[%s4 + $0x68] sm:$0xff]
  %v150 = vld [vmem:[%s4 + $0x70] sm:$0xff]
  %v151 = vld [vmem:[%s4 + $0x78] sm:$0xff]
  %v152 = vld [vmem:[%s5] sm:$0x1]
  %v154 = vlaneseq
  %v155 = vshrl.u32 %v154, 7
  %v156 = vsub.s32 0, %v155
  %v157 = vrot.slane %v152, %v156
  %159 = vmatprep.subr.mxu0 0.0
  %160 = vmatpush1.msra.mxu0 %v136
  %161 = vmatprep.subr.mxu0 0.0
  %162 = vmatpush1.msra.mxu0 %v137
  %163 = vmatprep.subr.mxu0 0.0
  %164 = vmatpush1.msra.mxu0 %v138
  %165 = vmatprep.subr.mxu0 0.0
  %166 = vmatpush1.msra.mxu0 %v139
  %167 = vmatprep.subr.mxu0 0.0
  %168 = vmatpush1.msra.mxu0 %v140
  %169 = vmatprep.subr.mxu0 0.0
  %170 = vmatpush1.msra.mxu0 %v141
  %171 = vmatprep.subr.mxu0 0.0
  %172 = vmatpush1.msra.mxu0 %v142
  %173 = vmatprep.subr.mxu0 0.0
  %174 = vmatpush1.msra.mxu0 %v143
  %175 = vmatprep.subr.mxu0 0.0
  %176 = vmatpush1.msra.mxu0 %v144
  %177 = vmatprep.subr.mxu0 0.0
  %178 = vmatpush1.msra.mxu0 %v145
  %179 = vmatprep.subr.mxu0 0.0
  %180 = vmatpush1.msra.mxu0 %v146
  %181 = vmatprep.subr.mxu0 0.0
  %182 = vmatpush1.msra.mxu0 %v147
  %183 = vmatprep.subr.mxu0 0.0
  %184 = vmatpush1.msra.mxu0 %v148
  %185 = vmatprep.subr.mxu0 0.0
  %186 = vmatpush1.msra.mxu0 %v149
  %187 = vmatprep.subr.mxu0 0.0
  %188 = vmatpush1.msra.mxu0 %v150
  %189 = vmatprep.subr.mxu0 0.0
  %190 = vmatpush1.msra.mxu0 %v151
  %191 = vmatprep.subr.mxu0 0.0
  %192 = vmatpush1.msra.mxu0 0.0
  %193 = vmatprep.subr.mxu0 0.0
  %194 = vmatpush1.msra.mxu0 0.0
  %195 = vmatprep.subr.mxu0 0.0
  %196 = vmatpush1.msra.mxu0 0.0
  %197 = vmatprep.subr.mxu0 0.0
  %198 = vmatpush1.msra.mxu0 0.0
  %199 = vmatprep.subr.mxu0 0.0
  %200 = vmatpush1.msra.mxu0 0.0
  %201 = vmatprep.subr.mxu0 0.0
  %202 = vmatpush1.msra.mxu0 0.0
  %203 = vmatprep.subr.mxu0 0.0
  %204 = vmatpush1.msra.mxu0 0.0
  %205 = vmatprep.subr.mxu0 0.0
  %206 = vmatpush1.msra.mxu0 0.0
  %207 = vmatprep.subr.mxu0 0.0
  %208 = vmatpush1.msra.mxu0 0.0
  %209 = vmatprep.subr.mxu0 0.0
  %210 = vmatpush1.msra.mxu0 0.0
  %211 = vmatprep.subr.mxu0 0.0
  %212 = vmatpush1.msra.mxu0 0.0
  %213 = vmatprep.subr.mxu0 0.0
  %214 = vmatpush1.msra.mxu0 0.0
  %215 = vmatprep.subr.mxu0 0.0
  %216 = vmatpush1.msra.mxu0 0.0
  %217 = vmatprep.subr.mxu0 0.0
  %218 = vmatpush1.msra.mxu0 0.0
  %219 = vmatprep.subr.mxu0 0.0
  %220 = vmatpush1.msra.mxu0 0.0
  %221 = vmatprep.subr.mxu0 0.0
  %222 = vmatpush1.msra.mxu0 0.0
  %223 = vmatprep.mubr.f32.mxu0 0.0
  %224 = vmatmul.mubr.f32.gmra.mrb[0].mxu0 %v135
  %v225 = vpop.f32.mrb[0].mxu0
  %v226 = vadd.f32 %v157, %v225
  %v227 = vpop.f32.mrb[0].mxu0
  %228 = vdwg.mxu0
  %v229 = vld [vmem:[%s6] sm:$0xff]
  %v230 = vld [vmem:[%s6 + $0x8] sm:$0xff]
  %v231 = vld [vmem:[%s6 + $0x10] sm:$0xff]
  %v232 = vld [vmem:[%s6 + $0x18] sm:$0xff]
  %v233 = vld [vmem:[%s6 + $0x20] sm:$0xff]
  %v234 = vld [vmem:[%s6 + $0x28] sm:$0xff]
  %v235 = vld [vmem:[%s6 + $0x30] sm:$0xff]
  %v236 = vld [vmem:[%s6 + $0x38] sm:$0xff]
  %v237 = vld [vmem:[%s6 + $0x40] sm:$0xff]
  %v238 = vld [vmem:[%s6 + $0x48] sm:$0xff]
  %v239 = vld [vmem:[%s6 + $0x50] sm:$0xff]
  %v240 = vld [vmem:[%s6 + $0x58] sm:$0xff]
  %v241 = vld [vmem:[%s6 + $0x60] sm:$0xff]
  %v242 = vld [vmem:[%s6 + $0x68] sm:$0xff]
  %v243 = vld [vmem:[%s6 + $0x70] sm:$0xff]
  %v244 = vld [vmem:[%s6 + $0x78] sm:$0xff]
  %v245 = vld [vmem:[%s7] sm:$0x1]
  %v247 = vlaneseq
  %v248 = vshrl.u32 %v247, 7
  %v249 = vsub.s32 0, %v248
  %v250 = vrot.slane %v245, %v249
  %252 = vmatprep.subr.mxu0 0.0
  %253 = vmatpush1.msra.mxu0 %v229
  %254 = vmatprep.subr.mxu0 0.0
  %255 = vmatpush1.msra.mxu0 %v230
  %256 = vmatprep.subr.mxu0 0.0
  %257 = vmatpush1.msra.mxu0 %v231
  %258 = vmatprep.subr.mxu0 0.0
  %259 = vmatpush1.msra.mxu0 %v232
  %260 = vmatprep.subr.mxu0 0.0
  %261 = vmatpush1.msra.mxu0 %v233
  %262 = vmatprep.subr.mxu0 0.0
  %263 = vmatpush1.msra.mxu0 %v234
  %264 = vmatprep.subr.mxu0 0.0
  %265 = vmatpush1.msra.mxu0 %v235
  %266 = vmatprep.subr.mxu0 0.0
  %267 = vmatpush1.msra.mxu0 %v236
  %268 = vmatprep.subr.mxu0 0.0
  %269 = vmatpush1.msra.mxu0 %v237
  %270 = vmatprep.subr.mxu0 0.0
  %271 = vmatpush1.msra.mxu0 %v238
  %272 = vmatprep.subr.mxu0 0.0
  %273 = vmatpush1.msra.mxu0 %v239
  %274 = vmatprep.subr.mxu0 0.0
  %275 = vmatpush1.msra.mxu0 %v240
  %276 = vmatprep.subr.mxu0 0.0
  %277 = vmatpush1.msra.mxu0 %v241
  %278 = vmatprep.subr.mxu0 0.0
  %279 = vmatpush1.msra.mxu0 %v242
  %280 = vmatprep.subr.mxu0 0.0
  %281 = vmatpush1.msra.mxu0 %v243
  %282 = vmatprep.subr.mxu0 0.0
  %283 = vmatpush1.msra.mxu0 %v244
  %284 = vmatprep.subr.mxu0 0.0
  %285 = vmatpush1.msra.mxu0 0.0
  %286 = vmatprep.subr.mxu0 0.0
  %287 = vmatpush1.msra.mxu0 0.0
  %288 = vmatprep.subr.mxu0 0.0
  %289 = vmatpush1.msra.mxu0 0.0
  %290 = vmatprep.subr.mxu0 0.0
  %291 = vmatpush1.msra.mxu0 0.0
  %292 = vmatprep.subr.mxu0 0.0
  %293 = vmatpush1.msra.mxu0 0.0
  %294 = vmatprep.subr.mxu0 0.0
  %295 = vmatpush1.msra.mxu0 0.0
  %296 = vmatprep.subr.mxu0 0.0
  %297 = vmatpush1.msra.mxu0 0.0
  %298 = vmatprep.subr.mxu0 0.0
  %299 = vmatpush1.msra.mxu0 0.0
  %300 = vmatprep.subr.mxu0 0.0
  %301 = vmatpush1.msra.mxu0 0.0
  %302 = vmatprep.subr.mxu0 0.0
  %303 = vmatpush1.msra.mxu0 0.0
  %304 = vmatprep.subr.mxu0 0.0
  %305 = vmatpush1.msra.mxu0 0.0
  %306 = vmatprep.subr.mxu0 0.0
  %307 = vmatpush1.msra.mxu0 0.0
  %308 = vmatprep.subr.mxu0 0.0
  %309 = vmatpush1.msra.mxu0 0.0
  %310 = vmatprep.subr.mxu0 0.0
  %311 = vmatpush1.msra.mxu0 0.0
  %312 = vmatprep.subr.mxu0 0.0
  %313 = vmatpush1.msra.mxu0 0.0
  %314 = vmatprep.subr.mxu0 0.0
  %315 = vmatpush1.msra.mxu0 0.0
  %316 = vmatprep.mubr.f32.mxu0 0.0
  %317 = vmatmul.mubr.f32.gmra.mrb[0].mxu0 %v135
  %v318 = vpop.f32.mrb[0].mxu0
  %v319 = vadd.f32 %v250, %v318
  %v320 = vpop.f32.mrb[0].mxu0
  %321 = vdwg.mxu0
  %v322 = vmul.f32 %v319, 0.5
  %v323 = vmul.f32 %v322, 1.442695
  %v324 = vpow.pop %v323
  %v325 = vld [vmem:[%s1] sm:$0xff]
  %v326 = vmul.f32 %v325, %v324
  %v327 = vadd.f32 %v226, %v326
  %v328 = vld [vmem:[%s8] sm:$0xff]
  %v329 = vld [vmem:[%s8 + $0x8] sm:$0xff]
  %v330 = vld [vmem:[%s8 + $0x10] sm:$0xff]
  %v331 = vld [vmem:[%s8 + $0x18] sm:$0xff]
  %v332 = vld [vmem:[%s8 + $0x20] sm:$0xff]
  %v333 = vld [vmem:[%s8 + $0x28] sm:$0xff]
  %v334 = vld [vmem:[%s8 + $0x30] sm:$0xff]
  %v335 = vld [vmem:[%s8 + $0x38] sm:$0xff]
  %v336 = vld [vmem:[%s8 + $0x40] sm:$0xff]
  %v337 = vld [vmem:[%s8 + $0x48] sm:$0xff]
  %v338 = vld [vmem:[%s8 + $0x50] sm:$0xff]
  %v339 = vld [vmem:[%s8 + $0x58] sm:$0xff]
  %v340 = vld [vmem:[%s8 + $0x60] sm:$0xff]
  %v341 = vld [vmem:[%s8 + $0x68] sm:$0xff]
  %v342 = vld [vmem:[%s8 + $0x70] sm:$0xff]
  %v343 = vld [vmem:[%s8 + $0x78] sm:$0xff]
  %v344 = vld [vmem:[%s9] sm:$0x1]
  %v346 = vlaneseq
  %v347 = vshrl.u32 %v346, 7
  %v348 = vsub.s32 0, %v347
  %v349 = vrot.slane %v344, %v348
  %351 = vmatprep.subr.mxu0 0.0
  %352 = vmatpush1.msra.mxu0 %v328
  %353 = vmatprep.subr.mxu0 0.0
  %354 = vmatpush1.msra.mxu0 %v329
  %355 = vmatprep.subr.mxu0 0.0
  %356 = vmatpush1.msra.mxu0 %v330
  %357 = vmatprep.subr.mxu0 0.0
  %358 = vmatpush1.msra.mxu0 %v331
  %359 = vmatprep.subr.mxu0 0.0
  %360 = vmatpush1.msra.mxu0 %v332
  %361 = vmatprep.subr.mxu0 0.0
  %362 = vmatpush1.msra.mxu0 %v333
  %363 = vmatprep.subr.mxu0 0.0
  %364 = vmatpush1.msra.mxu0 %v334
  %365 = vmatprep.subr.mxu0 0.0
  %366 = vmatpush1.msra.mxu0 %v335
  %367 = vmatprep.subr.mxu0 0.0
  %368 = vmatpush1.msra.mxu0 %v336
  %369 = vmatprep.subr.mxu0 0.0
  %370 = vmatpush1.msra.mxu0 %v337
  %371 = vmatprep.subr.mxu0 0.0
  %372 = vmatpush1.msra.mxu0 %v338
  %373 = vmatprep.subr.mxu0 0.0
  %374 = vmatpush1.msra.mxu0 %v339
  %375 = vmatprep.subr.mxu0 0.0
  %376 = vmatpush1.msra.mxu0 %v340
  %377 = vmatprep.subr.mxu0 0.0
  %378 = vmatpush1.msra.mxu0 %v341
  %379 = vmatprep.subr.mxu0 0.0
  %380 = vmatpush1.msra.mxu0 %v342
  %381 = vmatprep.subr.mxu0 0.0
  %382 = vmatpush1.msra.mxu0 %v343
  %383 = vmatprep.subr.mxu0 0.0
  %384 = vmatpush1.msra.mxu0 0.0
  %385 = vmatprep.subr.mxu0 0.0
  %386 = vmatpush1.msra.mxu0 0.0
  %387 = vmatprep.subr.mxu0 0.0
  %388 = vmatpush1.msra.mxu0 0.0
  %389 = vmatprep.subr.mxu0 0.0
  %390 = vmatpush1.msra.mxu0 0.0
  %391 = vmatprep.subr.mxu0 0.0
  %392 = vmatpush1.msra.mxu0 0.0
  %393 = vmatprep.subr.mxu0 0.0
  %394 = vmatpush1.msra.mxu0 0.0
  %395 = vmatprep.subr.mxu0 0.0
  %396 = vmatpush1.msra.mxu0 0.0
  %397 = vmatprep.subr.mxu0 0.0
  %398 = vmatpush1.msra.mxu0 0.0
  %399 = vmatprep.subr.mxu0 0.0
  %400 = vmatpush1.msra.mxu0 0.0
  %401 = vmatprep.subr.mxu0 0.0
  %402 = vmatpush1.msra.mxu0 0.0
  %403 = vmatprep.subr.mxu0 0.0
  %404 = vmatpush1.msra.mxu0 0.0
  %405 = vmatprep.subr.mxu0 0.0
  %406 = vmatpush1.msra.mxu0 0.0
  %407 = vmatprep.subr.mxu0 0.0
  %408 = vmatpush1.msra.mxu0 0.0
  %409 = vmatprep.subr.mxu0 0.0
  %410 = vmatpush1.msra.mxu0 0.0
  %411 = vmatprep.subr.mxu0 0.0
  %412 = vmatpush1.msra.mxu0 0.0
  %413 = vmatprep.subr.mxu0 0.0
  %414 = vmatpush1.msra.mxu0 0.0
  %415 = vmatprep.mubr.f32.mxu0 0.0
  %416 = vmatmul.mubr.f32.gmra.mrb[0].mxu0 %v327
  %v417 = vpop.f32.mrb[0].mxu0
  %v418 = vadd.f32 %v349, %v417
  %v419 = vpop.f32.mrb[0].mxu0
  %420 = vdwg.mxu0
  %v421 = vmax.f32 %v418, 0.0
  %v422 = vld [vmem:[%s10] sm:$0xff]
  %v423 = vld [vmem:[%s10 + $0x8] sm:$0xff]
  %v424 = vld [vmem:[%s10 + $0x10] sm:$0xff]
  %v425 = vld [vmem:[%s10 + $0x18] sm:$0xff]
  %v426 = vld [vmem:[%s10 + $0x20] sm:$0xff]
  %v427 = vld [vmem:[%s10 + $0x28] sm:$0xff]
  %v428 = vld [vmem:[%s10 + $0x30] sm:$0xff]
  %v429 = vld [vmem:[%s10 + $0x38] sm:$0xff]
  %v430 = vld [vmem:[%s10 + $0x40] sm:$0xff]
  %v431 = vld [vmem:[%s10 + $0x48] sm:$0xff]
  %v432 = vld [vmem:[%s10 + $0x50] sm:$0xff]
  %v433 = vld [vmem:[%s10 + $0x58] sm:$0xff]
  %v434 = vld [vmem:[%s10 + $0x60] sm:$0xff]
  %v435 = vld [vmem:[%s10 + $0x68] sm:$0xff]
  %v436 = vld [vmem:[%s10 + $0x70] sm:$0xff]
  %v437 = vld [vmem:[%s10 + $0x78] sm:$0xff]
  %v438 = vld [vmem:[%s11] sm:$0x1]
  %v440 = vlaneseq
  %v441 = vshrl.u32 %v440, 7
  %v442 = vsub.s32 0, %v441
  %v443 = vrot.slane %v438, %v442
  %445 = vmatprep.subr.mxu0 0.0
  %446 = vmatpush1.msra.mxu0 %v422
  %447 = vmatprep.subr.mxu0 0.0
  %448 = vmatpush1.msra.mxu0 %v423
  %449 = vmatprep.subr.mxu0 0.0
  %450 = vmatpush1.msra.mxu0 %v424
  %451 = vmatprep.subr.mxu0 0.0
  %452 = vmatpush1.msra.mxu0 %v425
  %453 = vmatprep.subr.mxu0 0.0
  %454 = vmatpush1.msra.mxu0 %v426
  %455 = vmatprep.subr.mxu0 0.0
  %456 = vmatpush1.msra.mxu0 %v427
  %457 = vmatprep.subr.mxu0 0.0
  %458 = vmatpush1.msra.mxu0 %v428
  %459 = vmatprep.subr.mxu0 0.0
  %460 = vmatpush1.msra.mxu0 %v429
  %461 = vmatprep.subr.mxu0 0.0
  %462 = vmatpush1.msra.mxu0 %v430
  %463 = vmatprep.subr.mxu0 0.0
  %464 = vmatpush1.msra.mxu0 %v431
  %465 = vmatprep.subr.mxu0 0.0
  %466 = vmatpush1.msra.mxu0 %v432
  %467 = vmatprep.subr.mxu0 0.0
  %468 = vmatpush1.msra.mxu0 %v433
  %469 = vmatprep.subr.mxu0 0.0
  %470 = vmatpush1.msra.mxu0 %v434
  %471 = vmatprep.subr.mxu0 0.0
  %472 = vmatpush1.msra.mxu0 %v435
  %473 = vmatprep.subr.mxu0 0.0
  %474 = vmatpush1.msra.mxu0 %v436
  %475 = vmatprep.subr.mxu0 0.0
  %476 = vmatpush1.msra.mxu0 %v437
  %477 = vmatprep.subr.mxu0 0.0
  %478 = vmatpush1.msra.mxu0 0.0
  %479 = vmatprep.subr.mxu0 0.0
  %480 = vmatpush1.msra.mxu0 0.0
  %481 = vmatprep.subr.mxu0 0.0
  %482 = vmatpush1.msra.mxu0 0.0
  %483 = vmatprep.subr.mxu0 0.0
  %484 = vmatpush1.msra.mxu0 0.0
  %485 = vmatprep.subr.mxu0 0.0
  %486 = vmatpush1.msra.mxu0 0.0
  %487 = vmatprep.subr.mxu0 0.0
  %488 = vmatpush1.msra.mxu0 0.0
  %489 = vmatprep.subr.mxu0 0.0
  %490 = vmatpush1.msra.mxu0 0.0
  %491 = vmatprep.subr.mxu0 0.0
  %492 = vmatpush1.msra.mxu0 0.0
  %493 = vmatprep.subr.mxu0 0.0
  %494 = vmatpush1.msra.mxu0 0.0
  %495 = vmatprep.subr.mxu0 0.0
  %496 = vmatpush1.msra.mxu0 0.0
  %497 = vmatprep.subr.mxu0 0.0
  %498 = vmatpush1.msra.mxu0 0.0
  %499 = vmatprep.subr.mxu0 0.0
  %500 = vmatpush1.msra.mxu0 0.0
  %501 = vmatprep.subr.mxu0 0.0
  %502 = vmatpush1.msra.mxu0 0.0
  %503 = vmatprep.subr.mxu0 0.0
  %504 = vmatpush1.msra.mxu0 0.0
  %505 = vmatprep.subr.mxu0 0.0
  %506 = vmatpush1.msra.mxu0 0.0
  %507 = vmatprep.subr.mxu0 0.0
  %508 = vmatpush1.msra.mxu0 0.0
  %509 = vmatprep.mubr.f32.mxu0 0.0
  %510 = vmatmul.mubr.f32.gmra.mrb[0].mxu0 %v421
  %v511 = vpop.f32.mrb[0].mxu0
  %v512 = vadd.f32 %v443, %v511
  %v513 = vpop.f32.mrb[0].mxu0
  %514 = vdwg.mxu0
  %v515 = vxor.u32 %v512, 2147483648
  %v516 = vmul.f32 %v515, 1.442695
  %v517 = vpow.pop %v516
  %v518 = vadd.f32 %v517, 1.0
  %v519 = vrcp.pop %v518
  %v520 = vmul.f32 1.0, %v519
  %521 = vst [vmem:[%s12] sm:$0xff] %v520
  %522 = vst [vmem:[%s12 + $0x8] sm:$0xff] %v226
  %523 = vst [vmem:[%s12 + $0x10] sm:$0xff] %v319
  // Predicated region
  $region50: #{vae_forward.1} parent=0 // pred_check
    _
  $region51: #{vae_forward.1} parent=0 // pred_check_branch
    %525 = sbr.rel (0) target = $region53
  $region52: #{vae_forward.1} parent=0 // pred_region
    _
  $region53: #{vae_forward.1} parent=0 // pred_fallthru
    _
  // Predicated region
  $region54: #{vae_forward.1} parent=0 // pred_check
    _
  $region55: #{vae_forward.1} parent=0 // pred_check_branch
    %527 = sbr.rel (0) target = $region57
  $region56: #{vae_forward.1} parent=0 // pred_region
    _
  $region57: #{vae_forward.1} parent=0 // pred_fallthru
    _

</llo_original>
